<compile_context>
chip_gen: v5e
topology: v5e:2x2
jax: 0.10.0
libtpu: 0.0.40
codegen_flags: <defaults>
</compile_context>

<pallas_src>
import functools

import jax
import jax.numpy as jnp
from jax.experimental import pallas as pl
from jax.experimental.pallas import tpu as pltpu


_VMEM_TILE_BUDGET = 12 * 1024 * 1024   # portable: v5e 16 MiB scoped, v6e 32 MiB,
                                        # v7x 64 MiB physical / 32 MiB scoped.
_VMEM_LIMIT_BYTES = 32 * 1024 * 1024    # safe to request on all three generations.


def _round_up(x, m):
    return (x + m - 1) // m * m


# ---------------------------------------------------------------------------
# Pallas kernels: tiled GEMM with fused BN-shift + ReLU epilogue.
# ---------------------------------------------------------------------------
def _gemm_bn_relu_kernel_acc(x_ref, w_ref, shift_ref, o_ref, acc_ref, *, use_rl):
    """Multi-step reduction: grid = (M//tm, N//tn, K//tk), reduction axis last."""
    @pl.when(pl.program_id(2) == 0)
    def _():
        acc_ref[...] = jnp.zeros_like(acc_ref)

    # bf16 x bf16 -> f32 accumulation on the MXU.
    acc_ref[...] += jnp.dot(x_ref[...], w_ref[...],
                            preferred_element_type=jnp.float32)

    @pl.when(pl.program_id(2) == pl.num_programs(2) - 1)
    def _():
        y = acc_ref[...] + shift_ref[...]
        if use_rl:
            y = jnp.maximum(y, 0.0)
        o_ref[...] = y.astype(o_ref.dtype)


def _gemm_bn_relu_kernel_single(x_ref, w_ref, shift_ref, o_ref, *, use_rl):
    """Single-K-step fast path: no f32 accumulator scratch, direct epilogue."""
    y = jnp.dot(x_ref[...], w_ref[...], preferred_element_type=jnp.float32)
    y = y + shift_ref[...]
    if use_rl:
        y = jnp.maximum(y, 0.0)
    o_ref[...] = y.astype(o_ref.dtype)


# ---------------------------------------------------------------------------
# Tile selection.
# ---------------------------------------------------------------------------
def _tile_vmem_bytes(tm, tn, tk):
    # double-buffered bf16 A/B/out tiles + f32 accumulator + f32 shift row.
    return (2 * tm * tk * 2 + 2 * tk * tn * 2 + 2 * tm * tn * 2
            + 2 * tn * 4 + tm * tn * 4)


def _best_tile(dim, candidates):
    """Pick the tile minimising padded extent; ties go to the larger tile."""
    best_t, best_key = None, None
    for t in candidates:
        if t > dim:
            continue
        key = (_round_up(dim, t), -t)
        if best_key is None or key < best_key:
            best_key, best_t = key, t
    return dim if best_t is None else best_t


def _choose_tiles(Mp, Kp, Np):
    """(tm, tn, tk) for padded GEMM dims (all multiples of 128)."""
    # tn: full padded Cout when small so the big patch matrix is streamed from
    # HBM exactly once; otherwise >=256 (256-wide MXU on v6e/v7x), up to 512 to
    # limit A re-streaming on wide-Cout layers.
    if Np <= 512:
        tn = Np
    else:
        tn = _best_tile(Np, (256, 384, 512))

    # tk: largest 128-multiple <= 2048 minimising K padding (full K when it
    # fits) -> fewest reduction steps, least acc read-modify-write traffic.
    tk = _best_tile(Kp, tuple(range(128, min(Kp, 2048) + 1, 128)))

    # tm: big tiles amortise per-step grid overhead (~0.35 us).
    tm = _best_tile(Mp, (128, 256, 512))

    # Keep the double-buffered working set inside a portable VMEM budget.
    def fits():
        return _tile_vmem_bytes(tm, tn, tk) <= _VMEM_TILE_BUDGET

    while not fits() and tk > 512:
        tk = _round_up(max(512, tk // 2), 128)
    while not fits() and tm > 128:
        tm = max(128, tm // 2)
    while not fits() and tn > 128:
        tn = _round_up(max(128, tn // 2), 128)
    return tm, tn, tk


# ---------------------------------------------------------------------------
# GEMM wrapper: relu(x_mat @ w_mat + shift), fused, bf16 in / bf16 out.
# ---------------------------------------------------------------------------
def _matmul_bn_relu(x_mat, w_mat, shift, *, use_rl):
    """x_mat: (M, K) bf16 patches, w_mat: (K, N) f32 (BN scale pre-folded),
    shift: (N,) f32.  Returns (M, N) bf16 of [relu](x_mat @ w_mat + shift)."""
    M, K = x_mat.shape
    Kw, N = w_mat.shape
    assert K == Kw

    Mp0, Kp0, Np0 = _round_up(M, 128), _round_up(K, 128), _round_up(N, 128)
    tm, tn, tk = _choose_tiles(Mp0, Kp0, Np0)
    Mp, Kp, Np = _round_up(Mp0, tm), _round_up(Kp0, tk), _round_up(Np0, tn)

    # v7x has 2 TensorCores: ensure the parallel part of the grid has >= 2
    # steps so both get work (halve tm down to 128 if needed).
    while (Mp // tm) * (Np // tn) < 2 and tm > 128:
        tm = max(128, tm // 2)
        Mp = _round_up(Mp0, tm)

    # bf16 operands; zero padding of K/N contributes 0 to the dot.
    x_p = jnp.pad(x_mat.astype(jnp.bfloat16), ((0, Mp - M), (0, Kp - K)))
    w_p = jnp.pad(w_mat.astype(jnp.bfloat16), ((0, Kp - K), (0, Np - N)))
    shift_p = jnp.pad(shift.astype(jnp.float32), (0, Np - N)).reshape(1, Np)

    n_i, n_j, n_k = Mp // tm, Np // tn, Kp // tk

    # Advisory cost: A is re-streamed once per Cout tile, W once per M tile.
    cost = pl.CostEstimate(
        flops=2 * Mp * Kp * Np,
        transcendentals=0,
        bytes_accessed=(Mp * Kp * 2) * n_j + (Kp * Np * 2) * n_i
                       + Np * 4 * n_i + Mp * Np * 2,
    )

    if n_k == 1:
        kernel = functools.partial(_gemm_bn_relu_kernel_single, use_rl=use_rl)
        grid = (n_i, n_j)
        in_specs = [
            pl.BlockSpec((tm, tk), lambda i, j: (i, 0)),
            pl.BlockSpec((tk, tn), lambda i, j: (0, j)),
            pl.BlockSpec((1, tn), lambda i, j: (0, j)),
        ]
        out_specs = pl.BlockSpec((tm, tn), lambda i, j: (i, j))
        scratch_shapes = []
        dims = ("parallel", "parallel")
    else:
        kernel = functools.partial(_gemm_bn_relu_kernel_acc, use_rl=use_rl)
        grid = (n_i, n_j, n_k)
        in_specs = [
            pl.BlockSpec((tm, tk), lambda i, j, k: (i, k)),
            pl.BlockSpec((tk, tn), lambda i, j, k: (k, j)),
            pl.BlockSpec((1, tn), lambda i, j, k: (0, j)),
        ]
        out_specs = pl.BlockSpec((tm, tn), lambda i, j, k: (i, j))
        scratch_shapes = [pltpu.VMEM((tm, tn), jnp.float32)]
        dims = ("parallel", "parallel", "arbitrary")

    out = pl.pallas_call(
        kernel,
        out_shape=jax.ShapeDtypeStruct((Mp, Np), jnp.bfloat16),
        grid_spec=pltpu.PrefetchScalarGridSpec(
            num_scalar_prefetch=0,
            grid=grid,
            in_specs=in_specs,
            out_specs=out_specs,
            scratch_shapes=scratch_shapes,
        ),
        compiler_params=pltpu.CompilerParams(
            dimension_semantics=dims,
            vmem_limit_bytes=_VMEM_LIMIT_BYTES),
        cost_estimate=cost,
    )(x_p, w_p, shift_p)

    return out[:M, :N]


# ---------------------------------------------------------------------------
# im2col in NHWC layout (pure slicing + concat, K order = (kh, kw, C)), bf16.
# ---------------------------------------------------------------------------
def _im2col_nhwc(x_nhwc, k, pad, stride):
    """x_nhwc: (N, H, W, C) -> (N*OH*OW, k*k*C), feature order (kh, kw, C)."""
    N, H, W, C = x_nhwc.shape
    OH = (H + 2 * pad - k) // stride + 1
    OW = (W + 2 * pad - k) // stride + 1
    xp = jnp.pad(x_nhwc, ((0, 0), (pad, pad), (pad, pad), (0, 0)))
    cols = []
    for kh in range(k):
        for kw in range(k):
            cols.append(
                xp[:, kh:kh + stride * OH:stride, kw:kw + stride * OW:stride, :])
    pat = cols[0] if len(cols) == 1 else jnp.concatenate(cols, axis=-1)
    return pat.reshape(N * OH * OW, k * k * C), OH, OW


class Conv2dBNReLU:
    """Pallas equivalent of the PyTorch `conv2d` module (groups=1, bias=False)."""

    def __init__(self, in_dim, out_dim, k, pad, stride,
                 groups=1, bias=False, use_bn=True, use_rl=True, key=None):
        assert groups == 1, "groups > 1 not implemented"
        assert not bias, "bias=True not used by the module defaults"
        self.in_dim, self.out_dim = in_dim, out_dim
        self.k, self.pad, self.stride = k, pad, stride
        self.use_bn, self.use_rl = use_bn, use_rl

        key = jax.random.PRNGKey(42) if key is None else key
        kw_, kg, kb, km, kv = jax.random.split(key, 5)
        fan_in = in_dim * k * k
        bound = 1.0 / jnp.sqrt(fan_in)
        # conv weight, PyTorch layout (Cout, Cin, kh, kw)
        self.weight = jax.random.uniform(
            kw_, (out_dim, in_dim, k, k), jnp.float32, -bound, bound)
        # BatchNorm parameters + running stats (eval-mode semantics)
        self.gamma = 1.0 + 0.1 * jax.random.normal(kg, (out_dim,), jnp.float32)
        self.beta = 0.1 * jax.random.normal(kb, (out_dim,), jnp.float32)
        self.running_mean = 0.1 * jax.random.normal(km, (out_dim,), jnp.float32)
        self.running_var = jnp.abs(
            1.0 + 0.1 * jax.random.normal(kv, (out_dim,), jnp.float32))
        self.eps = 1e-5

    def _bn_affine(self):
        if self.use_bn:
            scale = self.gamma / jnp.sqrt(self.running_var + self.eps)
            shift = self.beta - self.running_mean * scale
        else:
            scale = jnp.ones((self.out_dim,), jnp.float32)
            shift = jnp.zeros((self.out_dim,), jnp.float32)
        return scale, shift

    def __call__(self, x, *, output_nhwc=False):
        # x: (N, Cin, H, W) float32 (PyTorch layout).
        N = x.shape[0]
        # Cast to bf16 BEFORE transpose/im2col: halves HBM traffic of the patch
        # matrix (the largest intermediate in the pipeline).
        x_nhwc = jnp.transpose(x.astype(jnp.bfloat16), (0, 2, 3, 1))
        x_mat, OH, OW = _im2col_nhwc(x_nhwc, self.k, self.pad, self.stride)

        scale, shift = self._bn_affine()
        # Fold BN scale into the (constant) weights; epilogue only adds shift.
        # (Cout, Cin, kh, kw) -> (kh, kw, Cin, Cout) -> (K, Cout), matching the
        # im2col feature order (kh, kw, C).
        w_mat = jnp.transpose(self.weight, (2, 3, 1, 0)).reshape(-1, self.out_dim)
        w_mat = w_mat * scale[None, :]

        use_rl = self.use_bn and self.use_rl  # module applies ReLU only with BN

        y = _matmul_bn_relu(x_mat, w_mat, shift, use_rl=use_rl)   # (M, Cout) bf16
        y = y.reshape(N, OH, OW, self.out_dim)
        if output_nhwc:
            return y                      # bf16, NHWC — cheapest for layer chaining
        # Match the PyTorch module's output contract: NCHW float32.
        return y.transpose(0, 3, 1, 2).astype(jnp.float32)


def _reference(module, x):
    """Plain-JAX f32 reference for verification."""
    out = jax.lax.conv_general_dilated(
        x, module.weight,
        window_strides=(module.stride, module.stride),
        padding=[(module.pad, module.pad), (module.pad, module.pad)],
        dimension_numbers=("NCHW", "OIHW", "NCHW"))
    if module.use_bn:
        scale = module.gamma / jnp.sqrt(module.running_var + module.eps)
        shift = module.beta - module.running_mean * scale
        out = out * scale[None, :, None, None] + shift[None, :, None, None]
        if module.use_rl:
            out = jnp.maximum(out, 0.0)
    return out


if __name__ == "__main__":
    key = jax.random.PRNGKey(0)
    kx, kp, kp2 = jax.random.split(key, 3)

    # small shapes: batch=2, in_dim=4, out_dim=8, spatial=16, 3x3, pad=1, stride=1
    x = jax.random.normal(kx, (2, 4, 16, 16), jnp.float32)
    module = Conv2dBNReLU(in_dim=4, out_dim=8, k=3, pad=1, stride=1,
                          use_bn=True, use_rl=True, key=kp)
    out = jax.block_until_ready(module(x))
    ref = _reference(module, x)
    assert out.shape == ref.shape == (2, 8, 16, 16)
    # bf16 operands and bf16 output (f32 MXU accumulation) vs f32 reference.
    assert jnp.allclose(out, ref, atol=4e-2, rtol=4e-2), (
        float(jnp.max(jnp.abs(out - ref))))

    # 1x1 / stride-2 projection (BN, no ReLU) — exercises the other conv shape.
    module2 = Conv2dBNReLU(in_dim=4, out_dim=8, k=1, pad=0, stride=2,
                           use_bn=True, use_rl=False, key=kp2)
    out2 = jax.block_until_ready(module2(x))
    ref2 = _reference(module2, x)
    assert out2.shape == ref2.shape == (2, 8, 8, 8)
    assert jnp.allclose(out2, ref2, atol=4e-2, rtol=4e-2), (
        float(jnp.max(jnp.abs(out2 - ref2))))

    print("KERNEL_OK")
</pallas_src>

<mosaic_0001>
module attributes {stable_mosaic.version = 11 : i64} {
  func.func @_gemm_bn_relu_kernel_single(%arg0: i32, %arg1: i32, %arg2: memref<256x128xbf16, #tpu.memory_space<vmem>>, %arg3: memref<128x128xbf16, #tpu.memory_space<vmem>>, %arg4: memref<1x128xf32, #tpu.memory_space<vmem>>, %arg5: memref<256x128xbf16, #tpu.memory_space<vmem>>) attributes {dimension_semantics = [#tpu.dimension_semantics<parallel>, #tpu.dimension_semantics<parallel>], iteration_bounds = array<i64: 2, 1>, scalar_prefetch = 0 : i64, scratch_operands = 0 : i64, tpu.core_type = #tpu.core_type<tc>, window_params = [{transform_indices = @transform_0, window_bounds = array<i64: 256, 128>}, {transform_indices = @transform_1, window_bounds = array<i64: 128, 128>}, {transform_indices = @transform_2, window_bounds = array<i64: 1, 128>}, {transform_indices = @transform_3, window_bounds = array<i64: 256, 128>}]} {
    %c0 = arith.constant 0 : index
    %c0_0 = arith.constant 0 : index
    %0 = vector.load %arg2[%c0, %c0_0] : memref<256x128xbf16, #tpu.memory_space<vmem>>, vector<256x128xbf16>
    %c0_1 = arith.constant 0 : index
    %c0_2 = arith.constant 0 : index
    %1 = vector.load %arg3[%c0_1, %c0_2] : memref<128x128xbf16, #tpu.memory_space<vmem>>, vector<128x128xbf16>
    %cst = arith.constant dense<0.000000e+00> : vector<256x128xf32>
    %2 = tpu.matmul %0, %1, %cst {dimension_numbers = #tpu.dot_dimension_numbers<[1], [0], [0], [1], [0, 0, 1, 1], [], []>} : vector<256x128xbf16>, vector<128x128xbf16>, vector<256x128xf32> -> vector<256x128xf32>
    %c0_3 = arith.constant 0 : index
    %c0_4 = arith.constant 0 : index
    %3 = vector.load %arg4[%c0_3, %c0_4] : memref<1x128xf32, #tpu.memory_space<vmem>>, vector<1x128xf32>
    %4 = vector.broadcast %3 : vector<1x128xf32> to vector<256x128xf32>
    %5 = arith.addf %2, %4 : vector<256x128xf32>
    %cst_5 = arith.constant 0.000000e+00 : f32
    %6 = vector.broadcast %cst_5 : f32 to vector<256x128xf32>
    %7 = arith.maximumf %5, %6 : vector<256x128xf32>
    %8 = arith.truncf %7 : vector<256x128xf32> to vector<256x128xbf16>
    %c0_6 = arith.constant 0 : index
    %c0_7 = arith.constant 0 : index
    %9 = vector.load %arg5[%c0_6, %c0_7] : memref<256x128xbf16, #tpu.memory_space<vmem>>, vector<256x128xbf16>
    tpu.vector_store %arg5[%c0_6, %c0_7], %8 {strides = array<i32>} : memref<256x128xbf16, #tpu.memory_space<vmem>>, vector<256x128xbf16>,
    return
  }
  func.func @transform_0(%arg0: i32, %arg1: i32) -> (i32, i32) {
    %c0_i32 = arith.constant 0 : i32
    %c0_i32_0 = arith.constant 0 : i32
    return %arg0, %c0_i32 : i32, i32
  }
  func.func @transform_1(%arg0: i32, %arg1: i32) -> (i32, i32) {
    %c0_i32 = arith.constant 0 : i32
    %c0_i32_0 = arith.constant 0 : i32
    return %c0_i32, %arg1 : i32, i32
  }
  func.func @transform_2(%arg0: i32, %arg1: i32) -> (i32, i32) {
    %c0_i32 = arith.constant 0 : i32
    %c0_i32_0 = arith.constant 0 : i32
    return %c0_i32, %arg1 : i32, i32
  }
  func.func @transform_3(%arg0: i32, %arg1: i32) -> (i32, i32) {
    %c0_i32 = arith.constant 0 : i32
    return %arg0, %arg1 : i32, i32
  }
}

</mosaic_0001>

<llo_original>
// kernel: tpu_custom_call.1
$region0: #{tpu_custom_call.1}
  #allocation0 [shape = 'u32[]', space=smem, size = 0x4, offset = 0x4, fixed_abs, tag = 'smem constant byte address 0x4 - core index']
  #allocation1 [shape = 'u32[72,128]{1,0:T(1,128)}', space=vmem, size = 0x9000, scoped, tag = 'internal scratch']
  %s0 = inlined_call_operand.hbm [shape: bf16[512,128], index: 0, kind: input, shape index: {}]
  %s1 = inlined_call_operand.hbm [shape: bf16[128,128], index: 1, kind: input, shape index: {}]
  %s2 = inlined_call_operand.vmem [shape: f32[1,128], index: 2, kind: input, shape index: {}]
  %s3 = inlined_call_operand.hbm [shape: bf16[512,128], index: 3, kind: output, shape index: {}]
  %s4 = sld [smem:[#allocation0]]
  $region53: #{tpu_custom_call.1} parent=0
    _
  %s6 = ssub.s32 1, %s4
  %s7 = scalar_select 0, %s6, %s4
  $region1: #{tpu_custom_call.1} parent=0
    #allocation2 [shape = 'u8[131072]{0}', space=vmem, size = 0x20000, scoped, tag = 'input window, operand 0']
    #allocation3 [shape = 's32[2]{0}', space=sflag, size = 0x8, scoped, tag = 'scoped memory for tpu_custom_call.1']
    #allocation4 [shape = 's32[2]{0}', space=sflag, size = 0x8, scoped, tag = 'scoped memory for tpu_custom_call.1']
    #allocation5 [shape = 'u8[32768]{0}', space=vmem, size = 0x8000, scoped, tag = 'input window, operand 1, single buffered']
    #allocation6 [shape = 's32[1]{0}', space=sflag, size = 0x4, scoped, tag = 'scoped memory for tpu_custom_call.1']
    #allocation7 [shape = 'u8[131072]{0}', space=vmem, size = 0x20000, scoped, tag = 'output window, operand 0']
    %8 = vsyncpa [#allocation3], 0
    %s9 = scalar_lea.sflag [#allocation3], 1
    %10 = vsyncpa %s9, 0
    %11 = vsyncpa [#allocation6], 0
    %12 = vsyncpa [#allocation4], 0
    %s13 = scalar_lea.sflag [#allocation4], 1
    %14 = vsyncpa %s13, 0
    loop: start=0, step=1, limit=4
    $region2: #{tpu_custom_call.1} parent=1 // loop_pre_header
      _
    $region3: #{tpu_custom_call.1} parent=1 // loop_header
      %s16 = sphi 0, %s20
      %p17 = scmp.ge.s32.totalorder %s16, 4
      %s23 = sphi 0, %s35
      %s24 = sphi 0, %s31
      %s25 = sphi 0, %s23
      %s26 = sphi 0, %s24
      %s27 = sphi 0, %s25
      %s28 = sphi 0, %s26
      %s38 = sphi 0, %s40
      %s41 = sphi 0, %s38
      %s42 = sphi 0, %s41
      %s58 = sphi 0, %s42
      %s64 = sphi 0, %s66
      %s67 = sphi 0, %s64
      %s68 = sphi 0, %s67
      %s84 = sphi 0, %s68
      %s90 = sphi 0, %s92
      %s93 = sphi 0, %s90
      %s94 = sphi 0, %s93
      %s110 = sphi 0, %s94
      %s118 = sphi 0, %s120
      %s121 = sphi 0, %s118
      %s122 = sphi 0, %s121
      %s138 = sphi 0, %s122
    $region4: #{tpu_custom_call.1} parent=1 // loop_header_branch
      %19 = sbr.rel (%p17) target = $region8
    $region5: #{tpu_custom_call.1} parent=1 // loop_body
      %s21 = ssub.s32 %s16, 1
      %s22 = ssub.s32 %s16, 2
      %s29 = sadd.s32 1, %s24
      %p30 = scmp.ge.s32.totalorder %s29, 1
      %s31 = scalar_select %p30, 0, %s29
      %s32 = sadd.s32 1, %s23
      %s33 = scalar_select %p30, %s32, %s23
      %p34 = scmp.ge.s32.totalorder %s33, 2
      %s35 = scalar_select %p34, 0, %s33
      %s36 = ssub.s32 %s23, %s35
      %p37 = scmp.eq.s32.totalorder %s36, 0
      %s39 = sadd.s32 %s38, 1
      %s40 = scalar_select %p37, %s38, %s39
      %p43 = pneg %p37
      %p44 = scmp.eq.s32.totalorder %s16, 1
      %p45 = por %p43, %p44
      %p46 = scmp.ne.s32.totalorder %s38, %s41
      %p47 = scmp.eq.s32.totalorder %s16, 0
      %p48 = por %p46, %p47
      %p49 = scmp.ne.s32.totalorder %s38, %s41
      %p50 = scmp.eq.s32.totalorder %s21, 1
      %p51 = por %p49, %p50
      %p52 = scmp.ne.s32.totalorder %s41, %s42
      %p53 = scmp.eq.s32.totalorder %s21, 0
      %p54 = por %p52, %p53
      %p55 = scmp.ne.s32.totalorder %s41, %s42
      %p56 = scmp.eq.s32.totalorder %s22, 1
      %p57 = por %p55, %p56
      %p59 = scmp.ne.s32.totalorder %s42, %s58
      %p60 = scmp.eq.s32.totalorder %s22, 0
      %p61 = por %p59, %p60
      %s62 = ssub.s32 %s24, %s31
      %p63 = scmp.eq.s32.totalorder %s62, 0
      %s65 = sadd.s32 %s64, 1
      %s66 = scalar_select %p63, %s64, %s65
      %p69 = pneg %p63
      %p70 = scmp.eq.s32.totalorder %s16, 1
      %p71 = por %p69, %p70
      %p72 = scmp.ne.s32.totalorder %s64, %s67
      %p73 = scmp.eq.s32.totalorder %s16, 0
      %p74 = por %p72, %p73
      %p75 = scmp.ne.s32.totalorder %s64, %s67
      %p76 = scmp.eq.s32.totalorder %s21, 1
      %p77 = por %p75, %p76
      %p78 = scmp.ne.s32.totalorder %s67, %s68
      %p79 = scmp.eq.s32.totalorder %s21, 0
      %p80 = por %p78, %p79
      %p81 = scmp.ne.s32.totalorder %s67, %s68
      %p82 = scmp.eq.s32.totalorder %s22, 1
      %p83 = por %p81, %p82
      %p85 = scmp.ne.s32.totalorder %s68, %s84
      %p86 = scmp.eq.s32.totalorder %s22, 0
      %p87 = por %p85, %p86
      %s88 = ssub.s32 %s24, %s31
      %p89 = scmp.eq.s32.totalorder %s88, 0
      %s91 = sadd.s32 %s90, 1
      %s92 = scalar_select %p89, %s90, %s91
      %p95 = pneg %p89
      %p96 = scmp.eq.s32.totalorder %s16, 1
      %p97 = por %p95, %p96
      %p98 = scmp.ne.s32.totalorder %s90, %s93
      %p99 = scmp.eq.s32.totalorder %s16, 0
      %p100 = por %p98, %p99
      %p101 = scmp.ne.s32.totalorder %s90, %s93
      %p102 = scmp.eq.s32.totalorder %s21, 1
      %p103 = por %p101, %p102
      %p104 = scmp.ne.s32.totalorder %s93, %s94
      %p105 = scmp.eq.s32.totalorder %s21, 0
      %p106 = por %p104, %p105
      %p107 = scmp.ne.s32.totalorder %s93, %s94
      %p108 = scmp.eq.s32.totalorder %s22, 1
      %p109 = por %p107, %p108
      %p111 = scmp.ne.s32.totalorder %s94, %s110
      %p112 = scmp.eq.s32.totalorder %s22, 0
      %p113 = por %p111, %p112
      %s114 = ssub.s32 %s23, %s35
      %s115 = ssub.s32 %s24, %s31
      %s116 = sor.u32 %s114, %s115
      %p117 = scmp.eq.s32.totalorder %s116, 0
      %s119 = sadd.s32 %s118, 1
      %s120 = scalar_select %p117, %s118, %s119
      %p123 = pneg %p117
      %p124 = scmp.eq.s32.totalorder %s16, 1
      %p125 = por %p123, %p124
      %p126 = scmp.ne.s32.totalorder %s118, %s121
      %p127 = scmp.eq.s32.totalorder %s16, 0
      %p128 = por %p126, %p127
      %p129 = scmp.ne.s32.totalorder %s118, %s121
      %p130 = scmp.eq.s32.totalorder %s21, 1
      %p131 = por %p129, %p130
      %p132 = scmp.ne.s32.totalorder %s121, %s122
      %p133 = scmp.eq.s32.totalorder %s21, 0
      %p134 = por %p132, %p133
      %p135 = scmp.ne.s32.totalorder %s121, %s122
      %p136 = scmp.eq.s32.totalorder %s22, 1
      %p137 = por %p135, %p136
      %p139 = scmp.ne.s32.totalorder %s122, %s138
      %p140 = scmp.eq.s32.totalorder %s22, 0
      %p141 = por %p139, %p140
      %p142 = scmp.le.s32.totalorder 1, %s16
      %p143 = scmp.lt.s32.totalorder %s16, 3
      %p144 = pnand %p142, %p143
      %p145 = pneg %p144
      // Predicated region
      $region9: #{tpu_custom_call.1} parent=5 // pred_check
        _
      $region10: #{tpu_custom_call.1} parent=5 // pred_check_branch
        %147 = sbr.rel (%p144) target = $region12
      $region11: #{tpu_custom_call.1} parent=5 // pred_region
        %s148 = ssub.s32 %s16, 1
        // Predicated region
        $region13: #{tpu_custom_call.1} parent=11 // pred_check
          %p149 = pneg %p80
        $region14: #{tpu_custom_call.1} parent=11 // pred_check_branch
          %151 = sbr.rel (%p149) target = $region16
        $region15: #{tpu_custom_call.1} parent=11 // pred_region
          %153 = vsyncadd [#allocation6], 0
          %s154 = smul.addr %s26, 4
          %s155 = scalar_lea.hbm %s1, %s154
          %s156 = sshll.u32 %s155, 4
          %s157 = int_to_ptr.hbm [resolvable:$true] %s156
          %s158 = sshll.u32 [#allocation5], 4
          %s159 = int_to_ptr.vmem [resolvable:$true] %s158
          %164 = dma.hbm_to_vmem [thread:$0]  %s157, 1024, %s159, [#allocation6], 64, 64, 4
        $region16: #{tpu_custom_call.1} parent=11 // pred_fallthru
          _
        // Predicated region
        $region17: #{tpu_custom_call.1} parent=11 // pred_check
          %p165 = pneg %p106
        $region18: #{tpu_custom_call.1} parent=11 // pred_check_branch
          %167 = sbr.rel (%p165) target = $region20
        $region19: #{tpu_custom_call.1} parent=11 // pred_region
          %p168 = scmp.lt.s32.totalorder %s26, 0
          %s169 = scalar_select %p168, %s26, 0
          %s170 = scalar_lea.vmem %s2, %s169
        $region20: #{tpu_custom_call.1} parent=11 // pred_fallthru
          _
      $region12: #{tpu_custom_call.1} parent=5 // pred_fallthru
        _
      %p171 = scmp.lt.s32.totalorder %s16, 2
      // Predicated region
      $region21: #{tpu_custom_call.1} parent=5 // pred_check
        %p172 = pneg %p171
      $region22: #{tpu_custom_call.1} parent=5 // pred_check_branch
        %174 = sbr.rel (%p172) target = $region24
      $region23: #{tpu_custom_call.1} parent=5 // pred_region
        // Predicated region
        $region25: #{tpu_custom_call.1} parent=23 // pred_check
          %p175 = pneg %p48
        $region26: #{tpu_custom_call.1} parent=23 // pred_check_branch
          %177 = sbr.rel (%p175) target = $region28
        $region27: #{tpu_custom_call.1} parent=23 // pred_region
          %s178 = sand.u32 %s38, 1
          %s179 = scalar_lea.sflag [#allocation3], %s178
          %s180 = sand.u32 %s38, 1
          %s181 = smul.addr %s180, 128
          %s182 = scalar_lea.vmem [#allocation2], %s181
          %s183 = smul.u32 32, %s23
          %185 = vsyncadd %s179, 0
          %s186 = smul.addr %s183, 4
          %s187 = scalar_lea.hbm %s0, %s186
          %s188 = sshll.u32 %s187, 4
          %s189 = int_to_ptr.hbm [resolvable:$true] %s188
          %s190 = sshll.u32 %s182, 4
          %s191 = int_to_ptr.vmem [resolvable:$true] %s190
          %196 = dma.hbm_to_vmem [thread:$0]  %s189, 2048, %s191, %s179, 64, 64, 4
        $region28: #{tpu_custom_call.1} parent=23 // pred_fallthru
          _
      $region24: #{tpu_custom_call.1} parent=5 // pred_fallthru
        _
      %p197 = scmp.le.s32.totalorder 1, %s16
      %p198 = scmp.lt.s32.totalorder %s16, 3
      %p199 = pnand %p197, %p198
      %p200 = pneg %p199
      // Predicated region
      $region29: #{tpu_custom_call.1} parent=5 // pred_check
        _
      $region30: #{tpu_custom_call.1} parent=5 // pred_check_branch
        %202 = sbr.rel (%p199) target = $region32
      $region31: #{tpu_custom_call.1} parent=5 // pred_region
        %s203 = ssub.s32 %s16, 1
        %s204 = sand.u32 %s41, 1
        %s205 = scalar_lea.sflag [#allocation3], %s204
        %s206 = sand.u32 %s41, 1
        %s207 = smul.addr %s206, 128
        %s208 = scalar_lea.vmem [#allocation2], %s207
        // Predicated region
        $region33: #{tpu_custom_call.1} parent=31 // pred_check
          %p209 = pneg %p54
        $region34: #{tpu_custom_call.1} parent=31 // pred_check_branch
          %211 = sbr.rel (%p209) target = $region36
        $region35: #{tpu_custom_call.1} parent=31 // pred_region
          %213 = dma.done %s205, 2048
        $region36: #{tpu_custom_call.1} parent=31 // pred_fallthru
          _
        // Predicated region
        $region37: #{tpu_custom_call.1} parent=31 // pred_check
          %p214 = pneg %p80
        $region38: #{tpu_custom_call.1} parent=31 // pred_check_branch
          %216 = sbr.rel (%p214) target = $region40
        $region39: #{tpu_custom_call.1} parent=31 // pred_region
          %218 = dma.done [#allocation6], 1024
        $region40: #{tpu_custom_call.1} parent=31 // pred_fallthru
          _
        %s219 = sand.u32 %s41, 1
        %s220 = scalar_lea.sflag [#allocation3], %s219
        %s221 = sand.u32 %s41, 1
        %s222 = smul.addr %s221, 128
        %s223 = scalar_lea.vmem [#allocation2], %s222
        %p224 = pneg %p54
        %p225 = pneg %p51
        %p226 = pneg %p80
        %p227 = pneg %p77
        %p228 = scmp.lt.s32.totalorder %s26, 0
        %s229 = scalar_select %p228, %s26, 0
        %s230 = scalar_lea.vmem %s2, %s229
        %p231 = pneg %p106
        %p232 = pneg %p103
        %p233 = pneg %p134
        %p234 = pneg %p131
        %s235 = sand.u32 %s121, 1
        %s236 = scalar_lea.sflag [#allocation4], %s235
        %s237 = sand.u32 %s121, 1
        %s238 = smul.addr %s237, 128
        %s239 = scalar_lea.vmem [#allocation7], %s238
        %s240 = smul.u32 32, %s25
        %p241 = scmp.lt.s32.totalorder %s26, 0
        %s242 = scalar_select %p241, %s26, 0
        %s243 = scalar_lea.vmem %s2, %s242
        %s244 = smul.u32 32, %s25
        %v245 = vld [vmem:[%s208] sm:$0xf]
        %v246 = vld [vmem:[%s208 + $0x4] sm:$0xf]
        %v247 = vld [vmem:[%s208 + $0x8] sm:$0xf]
        %v248 = vld [vmem:[%s208 + $0xc] sm:$0xf]
        %v249 = vld [vmem:[%s208 + $0x10] sm:$0xf]
        %v250 = vld [vmem:[%s208 + $0x14] sm:$0xf]
        %v251 = vld [vmem:[%s208 + $0x18] sm:$0xf]
        %v252 = vld [vmem:[%s208 + $0x1c] sm:$0xf]
        %v253 = vld [vmem:[%s208 + $0x20] sm:$0xf]
        %v254 = vld [vmem:[%s208 + $0x24] sm:$0xf]
        %v255 = vld [vmem:[%s208 + $0x28] sm:$0xf]
        %v256 = vld [vmem:[%s208 + $0x2c] sm:$0xf]
        %v257 = vld [vmem:[%s208 + $0x30] sm:$0xf]
        %v258 = vld [vmem:[%s208 + $0x34] sm:$0xf]
        %v259 = vld [vmem:[%s208 + $0x38] sm:$0xf]
        %v260 = vld [vmem:[%s208 + $0x3c] sm:$0xf]
        %v261 = vld [vmem:[%s208 + $0x40] sm:$0xf]
        %v262 = vld [vmem:[%s208 + $0x44] sm:$0xf]
        %v263 = vld [vmem:[%s208 + $0x48] sm:$0xf]
        %v264 = vld [vmem:[%s208 + $0x4c] sm:$0xf]
        %v265 = vld [vmem:[%s208 + $0x50] sm:$0xf]
        %v266 = vld [vmem:[%s208 + $0x54] sm:$0xf]
        %v267 = vld [vmem:[%s208 + $0x58] sm:$0xf]
        %v268 = vld [vmem:[%s208 + $0x5c] sm:$0xf]
        %v269 = vld [vmem:[%s208 + $0x60] sm:$0xf]
        %v270 = vld [vmem:[%s208 + $0x64] sm:$0xf]
        %v271 = vld [vmem:[%s208 + $0x68] sm:$0xf]
        %v272 = vld [vmem:[%s208 + $0x6c] sm:$0xf]
        %v273 = vld [vmem:[%s208 + $0x70] sm:$0xf]
        %v274 = vld [vmem:[%s208 + $0x74] sm:$0xf]
        %v275 = vld [vmem:[%s208 + $0x78] sm:$0xf]
        %v276 = vld [vmem:[%s208 + $0x7c] sm:$0xf]
        %v277 = vld [vmem:[#allocation5] sm:$0xf]
        %v278 = vld [vmem:[#allocation5 + $0x4] sm:$0xf]
        %v279 = vld [vmem:[#allocation5 + $0x8] sm:$0xf]
        %v280 = vld [vmem:[#allocation5 + $0xc] sm:$0xf]
        %v281 = vld [vmem:[#allocation5 + $0x10] sm:$0xf]
        %v282 = vld [vmem:[#allocation5 + $0x14] sm:$0xf]
        %v283 = vld [vmem:[#allocation5 + $0x18] sm:$0xf]
        %v284 = vld [vmem:[#allocation5 + $0x1c] sm:$0xf]
        %v285 = vld [vmem:[#allocation5 + $0x20] sm:$0xf]
        %v286 = vld [vmem:[#allocation5 + $0x24] sm:$0xf]
        %v287 = vld [vmem:[#allocation5 + $0x28] sm:$0xf]
        %v288 = vld [vmem:[#allocation5 + $0x2c] sm:$0xf]
        %v289 = vld [vmem:[#allocation5 + $0x30] sm:$0xf]
        %v290 = vld [vmem:[#allocation5 + $0x34] sm:$0xf]
        %v291 = vld [vmem:[#allocation5 + $0x38] sm:$0xf]
        %v292 = vld [vmem:[#allocation5 + $0x3c] sm:$0xf]
        %v293 = vld [vmem:[%s243] sm:$0x1]
        %v295 = vperm.slane %v293, 0
        %v329 = vunpack.c.l.b16 %v245
        %v330 = vunpack.c.l.b16 %v246
        %v331 = vunpack.c.l.b16 %v247
        %v332 = vunpack.c.l.b16 %v248
        %v333 = vunpack.c.l.b16 %v249
        %v334 = vunpack.c.l.b16 %v250
        %v335 = vunpack.c.l.b16 %v251
        %v336 = vunpack.c.l.b16 %v252
        %v337 = vunpack.c.l.b16 %v253
        %v338 = vunpack.c.l.b16 %v254
        %v339 = vunpack.c.l.b16 %v255
        %v340 = vunpack.c.l.b16 %v256
        %v341 = vunpack.c.l.b16 %v257
        %v342 = vunpack.c.l.b16 %v258
        %v343 = vunpack.c.l.b16 %v259
        %v344 = vunpack.c.l.b16 %v260
        %v345 = vunpack.c.l.b16 %v261
        %v346 = vunpack.c.l.b16 %v262
        %v347 = vunpack.c.l.b16 %v263
        %v348 = vunpack.c.l.b16 %v264
        %v349 = vunpack.c.l.b16 %v265
        %v350 = vunpack.c.l.b16 %v266
        %v351 = vunpack.c.l.b16 %v267
        %v352 = vunpack.c.l.b16 %v268
        %v353 = vunpack.c.l.b16 %v269
        %v354 = vunpack.c.l.b16 %v270
        %v355 = vunpack.c.l.b16 %v271
        %v356 = vunpack.c.l.b16 %v272
        %v357 = vunpack.c.l.b16 %v273
        %v358 = vunpack.c.l.b16 %v274
        %v359 = vunpack.c.l.b16 %v275
        %v360 = vunpack.c.l.b16 %v276
        %v361 = vpack.c.b16 %v330, %v329
        %v362 = vpack.c.b16 %v332, %v331
        %v363 = vpack.c.b16 %v334, %v333
        %v364 = vpack.c.b16 %v336, %v335
        %v365 = vpack.c.b16 %v338, %v337
        %v366 = vpack.c.b16 %v340, %v339
        %v367 = vpack.c.b16 %v342, %v341
        %v368 = vpack.c.b16 %v344, %v343
        %v369 = vpack.c.b16 %v346, %v345
        %v370 = vpack.c.b16 %v348, %v347
        %v371 = vpack.c.b16 %v350, %v349
        %v372 = vpack.c.b16 %v352, %v351
        %v373 = vpack.c.b16 %v354, %v353
        %v374 = vpack.c.b16 %v356, %v355
        %v375 = vpack.c.b16 %v358, %v357
        %v376 = vpack.c.b16 %v360, %v359
        %v409 = vunpack.c.l.b16 %v277
        %v410 = vunpack.c.l.b16 %v278
        %v411 = vunpack.c.l.b16 %v279
        %v412 = vunpack.c.l.b16 %v280
        %v413 = vunpack.c.l.b16 %v281
        %v414 = vunpack.c.l.b16 %v282
        %v415 = vunpack.c.l.b16 %v283
        %v416 = vunpack.c.l.b16 %v284
        %v417 = vunpack.c.l.b16 %v285
        %v418 = vunpack.c.l.b16 %v286
        %v419 = vunpack.c.l.b16 %v287
        %v420 = vunpack.c.l.b16 %v288
        %v421 = vunpack.c.l.b16 %v289
        %v422 = vunpack.c.l.b16 %v290
        %v423 = vunpack.c.l.b16 %v291
        %v424 = vunpack.c.l.b16 %v292
        %v425 = vpack.c.b16 %v410, %v409
        %v426 = vpack.c.b16 %v412, %v411
        %v427 = vpack.c.b16 %v414, %v413
        %v428 = vpack.c.b16 %v416, %v415
        %v429 = vpack.c.b16 %v418, %v417
        %v430 = vpack.c.b16 %v420, %v419
        %v431 = vpack.c.b16 %v422, %v421
        %v432 = vpack.c.b16 %v424, %v423
        %441 = vmatpush.bf16.msra.mxu0 %v432
        %442 = vmatpush.bf16.msra.mxu0 %v431
        %443 = vmatpush.bf16.msra.mxu0 %v430
        %444 = vmatpush.bf16.msra.mxu0 %v429
        %445 = vmatpush.bf16.msra.mxu0 %v428
        %446 = vmatpush.bf16.msra.mxu0 %v427
        %447 = vmatpush.bf16.msra.mxu0 %v426
        %448 = vmatpush.bf16.msra.mxu0 %v425
        %449 = vmatmul.bf16.gmra.mxu0 %v361
        %v450 = vpop.f32.mrf.mxu0
        %v451 = vadd.f32 %v295, %v450
        %v452 = vpop.f32.mrf.mxu0
        %v453 = vadd.f32 %v295, %v452
        %454 = vmatmul.bf16.gmra.mxu0 %v362
        %v455 = vpop.f32.mrf.mxu0
        %v456 = vadd.f32 %v295, %v455
        %v457 = vpop.f32.mrf.mxu0
        %v458 = vadd.f32 %v295, %v457
        %459 = vmatmul.bf16.gmra.mxu0 %v363
        %v460 = vpop.f32.mrf.mxu0
        %v461 = vadd.f32 %v295, %v460
        %v462 = vpop.f32.mrf.mxu0
        %v463 = vadd.f32 %v295, %v462
        %464 = vmatmul.bf16.gmra.mxu0 %v364
        %v465 = vpop.f32.mrf.mxu0
        %v466 = vadd.f32 %v295, %v465
        %v467 = vpop.f32.mrf.mxu0
        %v468 = vadd.f32 %v295, %v467
        %469 = vmatmul.bf16.gmra.mxu0 %v365
        %v470 = vpop.f32.mrf.mxu0
        %v471 = vadd.f32 %v295, %v470
        %v472 = vpop.f32.mrf.mxu0
        %v473 = vadd.f32 %v295, %v472
        %474 = vmatmul.bf16.gmra.mxu0 %v366
        %v475 = vpop.f32.mrf.mxu0
        %v476 = vadd.f32 %v295, %v475
        %v477 = vpop.f32.mrf.mxu0
        %v478 = vadd.f32 %v295, %v477
        %479 = vmatmul.bf16.gmra.mxu0 %v367
        %v480 = vpop.f32.mrf.mxu0
        %v481 = vadd.f32 %v295, %v480
        %v482 = vpop.f32.mrf.mxu0
        %v483 = vadd.f32 %v295, %v482
        %484 = vmatmul.bf16.gmra.mxu0 %v368
        %v485 = vpop.f32.mrf.mxu0
        %v486 = vadd.f32 %v295, %v485
        %v487 = vpop.f32.mrf.mxu0
        %v488 = vadd.f32 %v295, %v487
        %489 = vmatmul.bf16.gmra.mxu0 %v369
        %v490 = vpop.f32.mrf.mxu0
        %v491 = vadd.f32 %v295, %v490
        %v492 = vpop.f32.mrf.mxu0
        %v493 = vadd.f32 %v295, %v492
        %494 = vmatmul.bf16.gmra.mxu0 %v370
        %v495 = vpop.f32.mrf.mxu0
        %v496 = vadd.f32 %v295, %v495
        %v497 = vpop.f32.mrf.mxu0
        %v498 = vadd.f32 %v295, %v497
        %499 = vmatmul.bf16.gmra.mxu0 %v371
        %v500 = vpop.f32.mrf.mxu0
        %v501 = vadd.f32 %v295, %v500
        %v502 = vpop.f32.mrf.mxu0
        %v503 = vadd.f32 %v295, %v502
        %504 = vmatmul.bf16.gmra.mxu0 %v372
        %v505 = vpop.f32.mrf.mxu0
        %v506 = vadd.f32 %v295, %v505
        %v507 = vpop.f32.mrf.mxu0
        %v508 = vadd.f32 %v295, %v507
        %509 = vmatmul.bf16.gmra.mxu0 %v373
        %v510 = vpop.f32.mrf.mxu0
        %v511 = vadd.f32 %v295, %v510
        %v512 = vpop.f32.mrf.mxu0
        %v513 = vadd.f32 %v295, %v512
        %514 = vmatmul.bf16.gmra.mxu0 %v374
        %v515 = vpop.f32.mrf.mxu0
        %v516 = vadd.f32 %v295, %v515
        %v517 = vpop.f32.mrf.mxu0
        %v518 = vadd.f32 %v295, %v517
        %519 = vmatmul.bf16.gmra.mxu0 %v375
        %v520 = vpop.f32.mrf.mxu0
        %v521 = vadd.f32 %v295, %v520
        %v522 = vpop.f32.mrf.mxu0
        %v523 = vadd.f32 %v295, %v522
        %524 = vmatmul.bf16.gmra.mxu0 %v376
        %v525 = vpop.f32.mrf.mxu0
        %v526 = vadd.f32 %v295, %v525
        %v527 = vpop.f32.mrf.mxu0
        %v528 = vadd.f32 %v295, %v527
        %529 = vdwg.mxu0
        %v530 = vmax.f32 %v451, 0.0
        %v531 = vmax.f32 %v453, 0.0
        %v532 = vmax.f32 %v456, 0.0
        %v533 = vmax.f32 %v458, 0.0
        %v534 = vmax.f32 %v461, 0.0
        %v535 = vmax.f32 %v463, 0.0
        %v536 = vmax.f32 %v466, 0.0
        %v537 = vmax.f32 %v468, 0.0
        %v538 = vmax.f32 %v471, 0.0
        %v539 = vmax.f32 %v473, 0.0
        %v540 = vmax.f32 %v476, 0.0
        %v541 = vmax.f32 %v478, 0.0
        %v542 = vmax.f32 %v481, 0.0
        %v543 = vmax.f32 %v483, 0.0
        %v544 = vmax.f32 %v486, 0.0
        %v545 = vmax.f32 %v488, 0.0
        %v546 = vmax.f32 %v491, 0.0
        %v547 = vmax.f32 %v493, 0.0
        %v548 = vmax.f32 %v496, 0.0
        %v549 = vmax.f32 %v498, 0.0
        %v550 = vmax.f32 %v501, 0.0
        %v551 = vmax.f32 %v503, 0.0
        %v552 = vmax.f32 %v506, 0.0
        %v553 = vmax.f32 %v508, 0.0
        %v554 = vmax.f32 %v511, 0.0
        %v555 = vmax.f32 %v513, 0.0
        %v556 = vmax.f32 %v516, 0.0
        %v557 = vmax.f32 %v518, 0.0
        %v558 = vmax.f32 %v521, 0.0
        %v559 = vmax.f32 %v523, 0.0
        %v560 = vmax.f32 %v526, 0.0
        %v561 = vmax.f32 %v528, 0.0
        %v562 = vpack.c.bf16 %v530, %v530
        %v563 = vpack.c.bf16 %v531, %v531
        %v564 = vpack.c.bf16 %v532, %v532
        %v565 = vpack.c.bf16 %v533, %v533
        %v566 = vpack.c.bf16 %v534, %v534
        %v567 = vpack.c.bf16 %v535, %v535
        %v568 = vpack.c.bf16 %v536, %v536
        %v569 = vpack.c.bf16 %v537, %v537
        %v570 = vpack.c.bf16 %v538, %v538
        %v571 = vpack.c.bf16 %v539, %v539
        %v572 = vpack.c.bf16 %v540, %v540
        %v573 = vpack.c.bf16 %v541, %v541
        %v574 = vpack.c.bf16 %v542, %v542
        %v575 = vpack.c.bf16 %v543, %v543
        %v576 = vpack.c.bf16 %v544, %v544
        %v577 = vpack.c.bf16 %v545, %v545
        %v578 = vpack.c.bf16 %v546, %v546
        %v579 = vpack.c.bf16 %v547, %v547
        %v580 = vpack.c.bf16 %v548, %v548
        %v581 = vpack.c.bf16 %v549, %v549
        %v582 = vpack.c.bf16 %v550, %v550
        %v583 = vpack.c.bf16 %v551, %v551
        %v584 = vpack.c.bf16 %v552, %v552
        %v585 = vpack.c.bf16 %v553, %v553
        %v586 = vpack.c.bf16 %v554, %v554
        %v587 = vpack.c.bf16 %v555, %v555
        %v588 = vpack.c.bf16 %v556, %v556
        %v589 = vpack.c.bf16 %v557, %v557
        %v590 = vpack.c.bf16 %v558, %v558
        %v591 = vpack.c.bf16 %v559, %v559
        %v592 = vpack.c.bf16 %v560, %v560
        %v593 = vpack.c.bf16 %v561, %v561
        %594 = vst [vmem:[%s239] sm:$0xf] %v562
        %595 = vst [vmem:[%s239 + $0x4] sm:$0xf] %v563
        %596 = vst [vmem:[%s239 + $0x8] sm:$0xf] %v564
        %597 = vst [vmem:[%s239 + $0xc] sm:$0xf] %v565
        %598 = vst [vmem:[%s239 + $0x10] sm:$0xf] %v566
        %599 = vst [vmem:[%s239 + $0x14] sm:$0xf] %v567
        %600 = vst [vmem:[%s239 + $0x18] sm:$0xf] %v568
        %601 = vst [vmem:[%s239 + $0x1c] sm:$0xf] %v569
        %602 = vst [vmem:[%s239 + $0x20] sm:$0xf] %v570
        %603 = vst [vmem:[%s239 + $0x24] sm:$0xf] %v571
        %604 = vst [vmem:[%s239 + $0x28] sm:$0xf] %v572
        %605 = vst [vmem:[%s239 + $0x2c] sm:$0xf] %v573
        %606 = vst [vmem:[%s239 + $0x30] sm:$0xf] %v574
        %607 = vst [vmem:[%s239 + $0x34] sm:$0xf] %v575
        %608 = vst [vmem:[%s239 + $0x38] sm:$0xf] %v576
        %609 = vst [vmem:[%s239 + $0x3c] sm:$0xf] %v577
        %610 = vst [vmem:[%s239 + $0x40] sm:$0xf] %v578
        %611 = vst [vmem:[%s239 + $0x44] sm:$0xf] %v579
        %612 = vst [vmem:[%s239 + $0x48] sm:$0xf] %v580
        %613 = vst [vmem:[%s239 + $0x4c] sm:$0xf] %v581
        %614 = vst [vmem:[%s239 + $0x50] sm:$0xf] %v582
        %615 = vst [vmem:[%s239 + $0x54] sm:$0xf] %v583
        %616 = vst [vmem:[%s239 + $0x58] sm:$0xf] %v584
        %617 = vst [vmem:[%s239 + $0x5c] sm:$0xf] %v585
        %618 = vst [vmem:[%s239 + $0x60] sm:$0xf] %v586
        %619 = vst [vmem:[%s239 + $0x64] sm:$0xf] %v587
        %620 = vst [vmem:[%s239 + $0x68] sm:$0xf] %v588
        %621 = vst [vmem:[%s239 + $0x6c] sm:$0xf] %v589
        %622 = vst [vmem:[%s239 + $0x70] sm:$0xf] %v590
        %623 = vst [vmem:[%s239 + $0x74] sm:$0xf] %v591
        %624 = vst [vmem:[%s239 + $0x78] sm:$0xf] %v592
        %625 = vst [vmem:[%s239 + $0x7c] sm:$0xf] %v593
        %s626 = sand.u32 %s121, 1
        %s627 = scalar_lea.sflag [#allocation4], %s626
        %s628 = sand.u32 %s121, 1
        %s629 = smul.addr %s628, 128
        %s630 = scalar_lea.vmem [#allocation7], %s629
        // Predicated region
        $region41: #{tpu_custom_call.1} parent=31 // pred_check
          %p631 = pneg %p131
        $region42: #{tpu_custom_call.1} parent=31 // pred_check_branch
          %633 = sbr.rel (%p631) target = $region44
        $region43: #{tpu_custom_call.1} parent=31 // pred_region
          %s634 = smul.u32 32, %s25
          %636 = vsyncadd %s627, 0
          %s637 = sadd.s32 %s26, %s634
          %s638 = smul.addr %s637, 4
          %s639 = scalar_lea.hbm %s3, %s638
          %s640 = sshll.u32 %s630, 4
          %s641 = int_to_ptr.vmem [resolvable:$true] %s640
          %s642 = sshll.u32 %s639, 4
          %s643 = int_to_ptr.hbm [resolvable:$true] %s642
          %648 = dma.vmem_to_hbm [thread:$0]  %s641, 2048, %s643, %s627, 64, 64, 4
        $region44: #{tpu_custom_call.1} parent=31 // pred_fallthru
          _
      $region32: #{tpu_custom_call.1} parent=5 // pred_fallthru
        _
      %p649 = scmp.le.s32.totalorder 2, %s16
      // Predicated region
      $region45: #{tpu_custom_call.1} parent=5 // pred_check
        %p650 = pneg %p649
      $region46: #{tpu_custom_call.1} parent=5 // pred_check_branch
        %652 = sbr.rel (%p650) target = $region48
      $region47: #{tpu_custom_call.1} parent=5 // pred_region
        %s653 = ssub.s32 %s16, 2
        // Predicated region
        $region49: #{tpu_custom_call.1} parent=47 // pred_check
          %p654 = pneg %p137
        $region50: #{tpu_custom_call.1} parent=47 // pred_check_branch
          %656 = sbr.rel (%p654) target = $region52
        $region51: #{tpu_custom_call.1} parent=47 // pred_region
          %s657 = sand.u32 %s122, 1
          %s658 = scalar_lea.sflag [#allocation4], %s657
          %s659 = sand.u32 %s122, 1
          %s660 = smul.addr %s659, 128
          %s661 = scalar_lea.vmem [#allocation7], %s660
          %663 = dma.done %s658, 2048
        $region52: #{tpu_custom_call.1} parent=47 // pred_fallthru
          _
      $region48: #{tpu_custom_call.1} parent=5 // pred_fallthru
        _
    $region6: #{tpu_custom_call.1} parent=1 // loop_footer
      %s20 = sadd.s32 1, %s16
    $region7: #{tpu_custom_call.1} parent=1 // loop_footer_branch
      %15 = sbr.rel target = $region3
    $region8: #{tpu_custom_call.1} parent=1 // loop_exit
      _
    %664 = vsyncpa [#allocation3], 1
    %s665 = scalar_lea.sflag [#allocation3], 1
    %666 = vsyncpa %s665, 1
    %667 = vsyncpa [#allocation6], 1
    %668 = vsyncpa [#allocation4], 1
    %s669 = scalar_lea.sflag [#allocation4], 1
    %670 = vsyncpa %s669, 1

</llo_original>
